<compile_context>
chip_gen: v6e
topology: v6e:2x2x1
jax: 0.10.0
libtpu: 0.0.40
codegen_flags: <defaults>
</compile_context>

<pallas_src>
import functools

import jax
import jax.numpy as jnp
from jax import lax
from jax.experimental import pallas as pl
from jax.experimental.pallas import tpu as pltpu

BLOCK_SIZE = 8       # block_size in the PyTorch script
N_EMBED = 32         # n_embed
VOCAB_SIZE = 65      # vocab_size (len(set(text)))

VOCAB_PAD = 128      # lane-dense logits width (65 -> 128)
K_PAD = 128          # combined one-hot width (65 token + 8 position -> pad 128)
NEG_INF = -1e30      # bias pad value so padded logit columns never affect the CE
_LANE = 128
_SUB = 8


# ----------------------------- kernels ------------------------------------- #

def _fused_logits(idx_ref, table_ref, bias_ref, *, seq_len, tile):
    """logits = [one-hot(token) | one-hot(65 + position)] @ combined_table + bias.

    All intermediate index/mask tensors are full (tile, VOCAB_PAD) shapes so the
    lowering only ever sees lane-dense 2-D vregs.
    """
    vpad = table_ref.shape[1]
    row0 = pl.program_id(0) * tile
    cols = lax.broadcasted_iota(jnp.int32, (tile, vpad), 1)          # lane index
    rows = lax.broadcasted_iota(jnp.int32, (tile, vpad), 0) + row0   # global row id
    pos = rows % seq_len                                             # position = row % T
    # token slots are [0, 65), position slots are [65, 73); no overlap -> single OR.
    onehot = jnp.logical_or(cols == idx_ref[...],
                            cols == pos + VOCAB_SIZE).astype(table_ref.dtype)
    logits = jnp.dot(onehot, table_ref[...],
                     preferred_element_type=jnp.float32) + bias_ref[...]
    return logits, cols, rows


def _infer_kernel(idx_ref, table_ref, bias_ref, logits_ref, *, seq_len, tile):
    logits, _, _ = _fused_logits(idx_ref, table_ref, bias_ref,
                                 seq_len=seq_len, tile=tile)
    logits_ref[...] = logits


def _train_kernel(idx_ref, tgt_ref, table_ref, bias_ref, logits_ref, loss_ref,
                  *, seq_len, tile, n_valid):
    logits, cols, rows = _fused_logits(idx_ref, table_ref, bias_ref,
                                       seq_len=seq_len, tile=tile)
    logits_ref[...] = logits
    # Cross-entropy partial sum for this tile (padded rows masked out).
    # Padded columns hold -1e30 bias, so exp() underflows to exactly 0 in the lse.
    m = jnp.max(logits, axis=-1, keepdims=True)
    lse = m + jnp.log(jnp.sum(jnp.exp(logits - m), axis=-1, keepdims=True))
    picked = jnp.sum(jnp.where(cols == tgt_ref[...], logits, 0.0),
                     axis=-1, keepdims=True)
    ce = lse - picked                                               # (tile, 1)
    # one True per *valid* row (row < n_valid, column 0) -> masked row-sum of CE.
    valid = jnp.logical_and(rows < n_valid, cols == 0)              # (tile, vpad)
    part = jnp.sum(jnp.where(valid, ce, 0.0))
    loss_ref[...] = jnp.broadcast_to(part, loss_ref.shape)


# ----------------------------- wrapper -------------------------------------- #

def init_params(key):
    k1, k2, k3, k4 = jax.random.split(key, 4)
    tok_table = jax.random.normal(k1, (VOCAB_SIZE, N_EMBED), jnp.float32)
    pos_table = jax.random.normal(k2, (BLOCK_SIZE, N_EMBED), jnp.float32)
    # nn.Linear(n_embed, vocab_size): weight (vocab, n_embed), bias (vocab,)
    bound = 1.0 / (N_EMBED ** 0.5)
    w = jax.random.uniform(k3, (VOCAB_SIZE, N_EMBED), jnp.float32, -bound, bound)
    b = jax.random.uniform(k4, (VOCAB_SIZE,), jnp.float32, -bound, bound)
    return {"tok_table": tok_table, "pos_table": pos_table, "w": w, "b": b}


def _prepare_tables(params):
    # Fuse embeddings + lm_head: logits = onehot_tok @ (tok_tab @ W^T)
    #                                   + onehot_pos @ (pos_tab @ W^T) + b.
    # These are trivial 65x32 / 8x32 matmuls; hoist/jit once if calling repeatedly.
    w_t = params["w"].T                                         # (n_embed, vocab)
    tok_logits = params["tok_table"] @ w_t                      # (vocab, vocab)
    pos_logits = params["pos_table"] @ w_t                      # (block_size, vocab)
    combined = jnp.concatenate([tok_logits, pos_logits], axis=0)   # (73, 65)
    table = jnp.zeros((K_PAD, VOCAB_PAD), jnp.float32)
    table = table.at[: VOCAB_SIZE + BLOCK_SIZE, :VOCAB_SIZE].set(combined)
    table = table.astype(jnp.bfloat16)          # one-hot is exact in bf16; full-rate MXU
    bias = jnp.full((1, VOCAB_PAD), NEG_INF, jnp.float32)
    bias = bias.at[0, :VOCAB_SIZE].set(params["b"])
    return table, bias


def _choose_tile(bt):
    if bt >= 512:
        return 512                      # >=512-row tiles reach ~85% of HBM roofline
    return max(8, ((bt + 7) // 8) * 8)  # small inputs: round up to a sublane multiple


def bigram_forward(params, idx, targets=None):
    B, T = idx.shape
    assert T <= BLOCK_SIZE, "sequence length must be <= block_size"
    BT = B * T
    tile = _choose_tile(BT)
    num_tiles = pl.cdiv(BT, tile)
    bt_pad = num_tiles * tile

    table, bias = _prepare_tables(params)

    idx_col = jnp.pad(idx.reshape(BT, 1).astype(jnp.int32),
                      ((0, bt_pad - BT), (0, 0)))

    # note: (tile, 1) int32 columns are slightly lane-wasteful but layout-safe;
    # the heavy traffic (table / logits) is fully lane-dense (last dim = 128).
    idx_spec = pl.BlockSpec((tile, 1), lambda i: (i, 0))
    table_spec = pl.BlockSpec((K_PAD, VOCAB_PAD), lambda i: (0, 0))
    bias_spec = pl.BlockSpec((1, VOCAB_PAD), lambda i: (0, 0))
    logits_spec = pl.BlockSpec((tile, VOCAB_PAD), lambda i: (i, 0))
    cparams = pltpu.CompilerParams(
        dimension_semantics=("parallel",),      # lets v7x megacore split the row grid
        vmem_limit_bytes=16 * 1024 * 1024,      # ~1.2 MiB/tile working set; safe on v5e..v7x
    )

    if targets is None:
        logits_pad = pl.pallas_call(
            functools.partial(_infer_kernel, seq_len=T, tile=tile),
            out_shape=jax.ShapeDtypeStruct((bt_pad, VOCAB_PAD), jnp.float32),
            grid=(num_tiles,),
            in_specs=[idx_spec, table_spec, bias_spec],
            out_specs=logits_spec,
            compiler_params=cparams,
        )(idx_col, table, bias)
        logits = logits_pad[:BT, :VOCAB_SIZE].reshape(B, T, VOCAB_SIZE)
        return logits, None

    tgt_col = jnp.pad(targets.reshape(BT, 1).astype(jnp.int32),
                      ((0, bt_pad - BT), (0, 0)))
    # loss partials: one (8, 128) lane-dense block per tile (value replicated),
    # reduced in the wrapper -> no cross-iteration accumulator / "arbitrary" axis.
    loss_spec = pl.BlockSpec((_SUB, _LANE), lambda i: (i, 0))
    logits_pad, loss_parts = pl.pallas_call(
        functools.partial(_train_kernel, seq_len=T, tile=tile, n_valid=BT),
        out_shape=(jax.ShapeDtypeStruct((bt_pad, VOCAB_PAD), jnp.float32),
                   jax.ShapeDtypeStruct((num_tiles * _SUB, _LANE), jnp.float32)),
        grid=(num_tiles,),
        in_specs=[idx_spec, idx_spec, table_spec, bias_spec],
        out_specs=(logits_spec, loss_spec),
        compiler_params=cparams,
    )(idx_col, tgt_col, table, bias)

    logits = logits_pad[:BT, :VOCAB_SIZE]
    loss = loss_parts.reshape(num_tiles, _SUB, _LANE)[:, 0, 0].sum() / BT
    return logits, loss   # logits viewed as (B*T, C), like PyTorch's training path


# ----------------------------- reference ------------------------------------ #

def reference_forward(params, idx, targets=None):
    B, T = idx.shape
    tok_emb = params["tok_table"][idx]                       # (B, T, C)
    pos_emb = params["pos_table"][jnp.arange(T)]             # (T, C)
    x = tok_emb + pos_emb
    logits = x @ params["w"].T + params["b"]                 # (B, T, vocab)
    if targets is None:
        return logits, None
    lg = logits.reshape(B * T, VOCAB_SIZE)
    tg = targets.reshape(B * T)
    lse = jax.nn.logsumexp(lg, axis=-1)
    picked = jnp.take_along_axis(lg, tg[:, None], axis=-1)[:, 0]
    return lg, jnp.mean(lse - picked)


if __name__ == "__main__":
    key = jax.random.PRNGKey(0)
    pkey, ikey, tkey, ikey2, tkey2 = jax.random.split(key, 5)
    params = init_params(pkey)

    # --- small case (single tile), training path ---
    B, T = 2, BLOCK_SIZE
    idx = jax.random.randint(ikey, (B, T), 0, VOCAB_SIZE, jnp.int32)
    targets = jax.random.randint(tkey, (B, T), 0, VOCAB_SIZE, jnp.int32)

    logits, loss = bigram_forward(params, idx, targets)
    jax.block_until_ready((logits, loss))

    ref_logits, ref_loss = reference_forward(params, idx, targets)
    assert logits.shape == (B * T, VOCAB_SIZE)
    # tolerance covers the bf16 quantization of the precombined logits table
    assert jnp.allclose(logits, ref_logits, atol=5e-2, rtol=0)
    assert jnp.allclose(loss, ref_loss, atol=5e-2, rtol=0)

    # --- inference path (targets=None, like generate()): no CE work at all ---
    logits_inf, loss_inf = bigram_forward(params, idx, None)
    jax.block_until_ready(logits_inf)
    assert logits_inf.shape == (B, T, VOCAB_SIZE)
    assert loss_inf is None
    assert jnp.allclose(logits_inf.reshape(B * T, VOCAB_SIZE), ref_logits,
                        atol=5e-2, rtol=0)

    # --- multi-tile case: exercises the parallel row grid + masked loss sum ---
    B2 = 160                          # BT = 1280 -> three 512-row tiles (padded)
    idx2 = jax.random.randint(ikey2, (B2, T), 0, VOCAB_SIZE, jnp.int32)
    targets2 = jax.random.randint(tkey2, (B2, T), 0, VOCAB_SIZE, jnp.int32)
    logits2, loss2 = bigram_forward(params, idx2, targets2)
    jax.block_until_ready((logits2, loss2))
    ref_logits2, ref_loss2 = reference_forward(params, idx2, targets2)
    assert logits2.shape == (B2 * T, VOCAB_SIZE)
    assert jnp.allclose(logits2, ref_logits2, atol=5e-2, rtol=0)
    assert jnp.allclose(loss2, ref_loss2, atol=5e-2, rtol=0)

    # TODO(synk): generate()'s torch.multinomial autoregressive loop is host-side
    # decode logic and is intentionally not implemented as a kernel.
    print("KERNEL_OK")
</pallas_src>

<mosaic_0001>
module attributes {stable_mosaic.version = 11 : i64} {
  func.func @_train_kernel(%arg0: i32, %arg1: memref<16x1xi32, #tpu.memory_space<vmem>>, %arg2: memref<16x1xi32, #tpu.memory_space<vmem>>, %arg3: memref<128x128xbf16, #tpu.memory_space<vmem>>, %arg4: memref<1x128xf32, #tpu.memory_space<vmem>>, %arg5: memref<16x128xf32, #tpu.memory_space<vmem>>, %arg6: memref<8x128xf32, #tpu.memory_space<vmem>>) attributes {dimension_semantics = [#tpu.dimension_semantics<parallel>], iteration_bounds = array<i64: 1>, scalar_prefetch = 0 : i64, scratch_operands = 0 : i64, tpu.core_type = #tpu.core_type<tc>, window_params = [{transform_indices = @transform_0, window_bounds = array<i64: 16, 1>}, {transform_indices = @transform_1, window_bounds = array<i64: 16, 1>}, {pipeline_mode = #tpu.pipeline_mode<synchronous>, transform_indices = @transform_2, window_bounds = array<i64: 128, 128>}, {pipeline_mode = #tpu.pipeline_mode<synchronous>, transform_indices = @transform_3, window_bounds = array<i64: 1, 128>}, {transform_indices = @transform_4, window_bounds = array<i64: 16, 128>}, {transform_indices = @transform_5, window_bounds = array<i64: 8, 128>}]} {
    %c16_i32 = arith.constant 16 : i32
    %0 = arith.muli %arg0, %c16_i32 : i32
    %1 = tpu.iota {dimensions = array<i32: 1>} : vector<16x128xi32>
    %2 = tpu.iota {dimensions = array<i32: 0>} : vector<16x128xi32>
    %3 = vector.broadcast %0 : i32 to vector<16x128xi32>
    %4 = arith.addi %2, %3 : vector<16x128xi32>
    %c8_i32 = arith.constant 8 : i32
    %c0_i32 = arith.constant 0 : i32
    %5 = arith.cmpi eq, %c8_i32, %c0_i32 : i32
    %c1_i32 = arith.constant 1 : i32
    %6 = arith.select %5, %c1_i32, %c8_i32 : i32
    %7 = vector.broadcast %6 : i32 to vector<16x128xi32>
    %8 = arith.remsi %4, %7 : vector<16x128xi32>
    %c0_i32_0 = arith.constant 0 : i32
    %9 = vector.broadcast %c0_i32_0 : i32 to vector<16x128xi32>
    %10 = arith.cmpi ne, %8, %9 : vector<16x128xi32>
    %c0_i32_1 = arith.constant 0 : i32
    %11 = vector.broadcast %c0_i32_1 : i32 to vector<16x128xi32>
    %12 = arith.cmpi slt, %8, %11 : vector<16x128xi32>
    %c0_i32_2 = arith.constant 0 : i32
    %13 = arith.cmpi slt, %6, %c0_i32_2 : i32
    %14 = vector.broadcast %13 : i1 to vector<16x128xi1>
    %15 = vector.broadcast %14 : vector<16x128xi1> to vector<16x128xi1>
    %16 = arith.xori %12, %15 : vector<16x128xi1>
    %17 = arith.andi %16, %10 : vector<16x128xi1>
    %18 = vector.broadcast %6 : i32 to vector<16x128xi32>
    %19 = arith.addi %8, %18 : vector<16x128xi32>
    %20 = arith.select %17, %19, %8 : vector<16x128xi1>, vector<16x128xi32>
    %c0 = arith.constant 0 : index
    %c0_3 = arith.constant 0 : index
    %21 = vector.load %arg1[%c0, %c0_3] : memref<16x1xi32, #tpu.memory_space<vmem>>, vector<16x1xi32>
    %22 = vector.broadcast %21 : vector<16x1xi32> to vector<16x128xi32>
    %23 = arith.cmpi eq, %1, %22 : vector<16x128xi32>
    %c65_i32 = arith.constant 65 : i32
    %24 = vector.broadcast %c65_i32 : i32 to vector<16x128xi32>
    %25 = arith.addi %20, %24 : vector<16x128xi32>
    %26 = arith.cmpi eq, %1, %25 : vector<16x128xi32>
    %27 = arith.ori %23, %26 : vector<16x128xi1>
    %28 = arith.extui %27 : vector<16x128xi1> to vector<16x128xi32>
    %29 = arith.sitofp %28 : vector<16x128xi32> to vector<16x128xf32>
    %30 = arith.truncf %29 : vector<16x128xf32> to vector<16x128xbf16>
    %c0_4 = arith.constant 0 : index
    %c0_5 = arith.constant 0 : index
    %31 = vector.load %arg3[%c0_4, %c0_5] : memref<128x128xbf16, #tpu.memory_space<vmem>>, vector<128x128xbf16>
    %cst = arith.constant dense<0.000000e+00> : vector<16x128xf32>
    %32 = tpu.matmul %30, %31, %cst {dimension_numbers = #tpu.dot_dimension_numbers<[1], [0], [0], [1], [0, 0, 1, 1], [], []>} : vector<16x128xbf16>, vector<128x128xbf16>, vector<16x128xf32> -> vector<16x128xf32>
    %c0_6 = arith.constant 0 : index
    %c0_7 = arith.constant 0 : index
    %33 = vector.load %arg4[%c0_6, %c0_7] : memref<1x128xf32, #tpu.memory_space<vmem>>, vector<1x128xf32>
    %34 = vector.broadcast %33 : vector<1x128xf32> to vector<16x128xf32>
    %35 = arith.addf %32, %34 : vector<16x128xf32>
    %c0_8 = arith.constant 0 : index
    %c0_9 = arith.constant 0 : index
    %36 = vector.load %arg5[%c0_8, %c0_9] : memref<16x128xf32, #tpu.memory_space<vmem>>, vector<16x128xf32>
    tpu.vector_store %arg5[%c0_8, %c0_9], %35 {strides = array<i32>} : memref<16x128xf32, #tpu.memory_space<vmem>>, vector<16x128xf32>,
    %cst_10 = arith.constant dense<0xFF800000> : vector<16xf32>
    %37 = vector.multi_reduction <maximumf>, %35, %cst_10 [1] : vector<16x128xf32> to vector<16xf32>
    %38 = vector.shape_cast %37 : vector<16xf32> to vector<16x1xf32>
    %39 = vector.broadcast %38 : vector<16x1xf32> to vector<16x128xf32>
    %40 = arith.subf %35, %39 : vector<16x128xf32>
    %41 = math.exp %40 : vector<16x128xf32>
    %cst_11 = arith.constant dense<0.000000e+00> : vector<16xf32>
    %42 = vector.multi_reduction <add>, %41, %cst_11 [1] : vector<16x128xf32> to vector<16xf32>
    %43 = vector.shape_cast %42 : vector<16xf32> to vector<16x1xf32>
    %44 = math.log %43 : vector<16x1xf32>
    %45 = arith.addf %38, %44 : vector<16x1xf32>
    %c0_12 = arith.constant 0 : index
    %c0_13 = arith.constant 0 : index
    %46 = vector.load %arg2[%c0_12, %c0_13] : memref<16x1xi32, #tpu.memory_space<vmem>>, vector<16x1xi32>
    %47 = vector.broadcast %46 : vector<16x1xi32> to vector<16x128xi32>
    %48 = arith.cmpi eq, %1, %47 : vector<16x128xi32>
    %cst_14 = arith.constant 0.000000e+00 : f32
    %49 = vector.broadcast %cst_14 : f32 to vector<16x128xf32>
    %50 = arith.select %48, %35, %49 : vector<16x128xi1>, vector<16x128xf32>
    %cst_15 = arith.constant dense<0.000000e+00> : vector<16xf32>
    %51 = vector.multi_reduction <add>, %50, %cst_15 [1] : vector<16x128xf32> to vector<16xf32>
    %52 = vector.shape_cast %51 : vector<16xf32> to vector<16x1xf32>
    %53 = arith.subf %45, %52 : vector<16x1xf32>
    %c16_i32_16 = arith.constant 16 : i32
    %54 = vector.broadcast %c16_i32_16 : i32 to vector<16x128xi32>
    %55 = arith.cmpi slt, %4, %54 : vector<16x128xi32>
    %c0_i32_17 = arith.constant 0 : i32
    %56 = vector.broadcast %c0_i32_17 : i32 to vector<16x128xi32>
    %57 = arith.cmpi eq, %1, %56 : vector<16x128xi32>
    %58 = arith.andi %55, %57 : vector<16x128xi1>
    %cst_18 = arith.constant 0.000000e+00 : f32
    %59 = vector.shape_cast %53 : vector<16x1xf32> to vector<16x1xf32>
    %60 = vector.broadcast %59 : vector<16x1xf32> to vector<16x128xf32>
    %61 = vector.broadcast %cst_18 : f32 to vector<16x128xf32>
    %62 = arith.select %58, %60, %61 : vector<16x128xi1>, vector<16x128xf32>
    %63 = vector.shape_cast %62 : vector<16x128xf32> to vector<1x16x128xf32>
    %cst_19 = arith.constant dense<0.000000e+00> : vector<1xf32>
    %64 = vector.multi_reduction <add>, %63, %cst_19 [1, 2] : vector<1x16x128xf32> to vector<1xf32>
    %65 = vector.shape_cast %64 : vector<1xf32> to vector<1x1x1xf32>
    %66 = vector.extract %65[0, 0, 0] : f32 from vector<1x1x1xf32>
    %67 = vector.broadcast %66 : f32 to vector<8x128xf32>
    %c0_20 = arith.constant 0 : index
    %c0_21 = arith.constant 0 : index
    %68 = vector.load %arg6[%c0_20, %c0_21] : memref<8x128xf32, #tpu.memory_space<vmem>>, vector<8x128xf32>
    tpu.vector_store %arg6[%c0_20, %c0_21], %67 {strides = array<i32>} : memref<8x128xf32, #tpu.memory_space<vmem>>, vector<8x128xf32>,
    return
  }
  func.func @transform_0(%arg0: i32) -> (i32, i32) {
    %c0_i32 = arith.constant 0 : i32
    %c0_i32_0 = arith.constant 0 : i32
    return %arg0, %c0_i32 : i32, i32
  }
  func.func @transform_1(%arg0: i32) -> (i32, i32) {
    %c0_i32 = arith.constant 0 : i32
    %c0_i32_0 = arith.constant 0 : i32
    return %arg0, %c0_i32 : i32, i32
  }
  func.func @transform_2(%arg0: i32) -> (i32, i32) {
    %c0_i32 = arith.constant 0 : i32
    %c0_i32_0 = arith.constant 0 : i32
    %c0_i32_1 = arith.constant 0 : i32
    return %c0_i32, %c0_i32_0 : i32, i32
  }
  func.func @transform_3(%arg0: i32) -> (i32, i32) {
    %c0_i32 = arith.constant 0 : i32
    %c0_i32_0 = arith.constant 0 : i32
    %c0_i32_1 = arith.constant 0 : i32
    return %c0_i32, %c0_i32_0 : i32, i32
  }
  func.func @transform_4(%arg0: i32) -> (i32, i32) {
    %c0_i32 = arith.constant 0 : i32
    %c0_i32_0 = arith.constant 0 : i32
    return %arg0, %c0_i32 : i32, i32
  }
  func.func @transform_5(%arg0: i32) -> (i32, i32) {
    %c0_i32 = arith.constant 0 : i32
    %c0_i32_0 = arith.constant 0 : i32
    return %arg0, %c0_i32 : i32, i32
  }
}

</mosaic_0001>

<llo_original>
// kernel: tpu_custom_call.1
$region0: #{tpu_custom_call.1}
  #allocation0 [shape = 'u32[]', space=smem, size = 0x4, offset = 0x4, fixed_abs, tag = 'smem constant byte address 0x4 - core index']
  #allocation1 [shape = 'u32[144,128]{1,0:T(1,128)}', space=vmem, size = 0x12000, scoped, tag = 'internal scratch']
  %s0 = inlined_call_operand.vmem [shape: s32[16,1], index: 0, kind: input, shape index: {}]
  %s1 = inlined_call_operand.vmem [shape: s32[16,1], index: 1, kind: input, shape index: {}]
  %s2 = inlined_call_operand.hbm [shape: bf16[128,128], index: 2, kind: input, shape index: {}]
  %s3 = inlined_call_operand.vmem [shape: f32[1,128], index: 3, kind: input, shape index: {}]
  %s4 = inlined_call_operand.hbm [shape: f32[16,128], index: 4, kind: output, shape index: {0}]
  %s5 = inlined_call_operand.hbm [shape: f32[8,128], index: 5, kind: output, shape index: {1}]
  %6 = xla_tuple %s4, %s5
  %s7 = sld [smem:[#allocation0]]
  $region38: #{tpu_custom_call.1} parent=0
    _
  %s9 = ssub.s32 1, %s7
  %s10 = scalar_select 0, %s9, %s7
  $region1: #{tpu_custom_call.1} parent=0
    #allocation2 [shape = 'u8[32768]{0}', space=vmem, size = 0x8000, scoped, tag = 'input window, operand 2, single buffered']
    #allocation3 [shape = 's32[1]{0}', space=sflag, size = 0x4, scoped, tag = 'scoped memory for tpu_custom_call.1']
    #allocation4 [shape = 's32[1]{0}', space=sflag, size = 0x4, scoped, tag = 'scoped memory for tpu_custom_call.1']
    #allocation5 [shape = 'u8[8192]{0}', space=vmem, size = 0x2000, scoped, tag = 'output window, operand 0, single buffered']
    #allocation6 [shape = 'u8[4096]{0}', space=vmem, size = 0x1000, scoped, tag = 'output window, operand 1, single buffered']
    #allocation7 [shape = 's32[1]{0}', space=sflag, size = 0x4, scoped, tag = 'scoped memory for tpu_custom_call.1']
    %11 = vsyncpa [#allocation3], 0
    %12 = vsyncpa [#allocation4], 0
    %13 = vsyncpa [#allocation7], 0
    // Predicated region
    $region2: #{tpu_custom_call.1} parent=1 // pred_check
      _
    $region3: #{tpu_custom_call.1} parent=1 // pred_check_branch
      %15 = sbr.rel (0) target = $region5
    $region4: #{tpu_custom_call.1} parent=1 // pred_region
      _
    $region5: #{tpu_custom_call.1} parent=1 // pred_fallthru
      _
    // Predicated region
    $region6: #{tpu_custom_call.1} parent=1 // pred_check
      _
    $region7: #{tpu_custom_call.1} parent=1 // pred_check_branch
      %17 = sbr.rel (0) target = $region9
    $region8: #{tpu_custom_call.1} parent=1 // pred_region
      _
    $region9: #{tpu_custom_call.1} parent=1 // pred_fallthru
      _
    // Predicated region
    $region10: #{tpu_custom_call.1} parent=1 // pred_check
      _
    $region11: #{tpu_custom_call.1} parent=1 // pred_check_branch
      %19 = sbr.rel (0) target = $region13
    $region12: #{tpu_custom_call.1} parent=1 // pred_region
      %s21 = ssub.s32 1024, 1024
      %22 = vsyncadd [#allocation3], %s21
      %s23 = sshll.u32 [#allocation2], 4
      %s24 = int_to_ptr.vmem [resolvable:$true] %s23
      %29 = dma.hbm_to_vmem [thread:$0]  %s2, 1024, %s24, [#allocation3], 64, 64, 4
    $region13: #{tpu_custom_call.1} parent=1 // pred_fallthru
      _
    // Predicated region
    $region14: #{tpu_custom_call.1} parent=1 // pred_check
      _
    $region15: #{tpu_custom_call.1} parent=1 // pred_check_branch
      %31 = sbr.rel (0) target = $region17
    $region16: #{tpu_custom_call.1} parent=1 // pred_region
      _
    $region17: #{tpu_custom_call.1} parent=1 // pred_fallthru
      _
    // Predicated region
    $region18: #{tpu_custom_call.1} parent=1 // pred_check
      _
    $region19: #{tpu_custom_call.1} parent=1 // pred_check_branch
      %33 = sbr.rel (0) target = $region21
    $region20: #{tpu_custom_call.1} parent=1 // pred_region
      %34 = dma.done [#allocation3], 1024
    $region21: #{tpu_custom_call.1} parent=1 // pred_fallthru
      _
    %s36 = smul.u32 0, 16
    %v37 = vlaneseq
    %v38 = vand.u32 %v37, 127
    %v39 = vlaneseq
    %v40 = vshrl.u32 %v39, 7
    %v41 = vadd.s32 %v40, 8
    %v42 = vstv %s36
    %v43 = vadd.s32 %v40, %v42
    %v44 = vadd.s32 %v41, %v42
    %vm45 = vcmp.lt.s32.totalorder %v43, 0
    %v46 = vsub.s32 0, %v43
    %v47 = vsel %vm45, %v46, %v43
    %v48 = vshrl.u32 %v47, 3
    %v49 = vand.u32 %v47, 7
    %v50 = vsub.s32 0, %v49
    %v51 = vsel %vm45, %v50, %v49
    %vm52 = vcmp.lt.s32.totalorder %v44, 0
    %v53 = vsub.s32 0, %v44
    %v54 = vsel %vm52, %v53, %v44
    %v55 = vshrl.u32 %v54, 3
    %v56 = vand.u32 %v54, 7
    %v57 = vsub.s32 0, %v56
    %v58 = vsel %vm52, %v57, %v56
    %vm59 = vcmp.ne.s32.totalorder %v51, 0
    %vm60 = vcmp.ne.s32.totalorder %v58, 0
    %vm61 = vcmp.lt.s32.totalorder %v51, 0
    %vm62 = vcmp.lt.s32.totalorder %v58, 0
    %vm63 = vmand %vm61, %vm59
    %vm64 = vmand %vm62, %vm60
    %v65 = vadd.s32 %v51, 8
    %v66 = vadd.s32 %v58, 8
    %v67 = vsel %vm63, %v65, %v51
    %v68 = vsel %vm64, %v66, %v58
    %v69 = vld [vmem:[%s0] sm:$0xff]
    %v70 = vld [vmem:[%s0 + $0x8] sm:$0xff]
    %71 = vset.pattern.permute.xlu0 0
    %72 = vperm.xlu0 %71, %v69
    %v73 = vpop.permute.xlu0 %72
    %74 = vset.pattern.permute.xlu0 0
    %75 = vperm.xlu0 %74, %v70
    %v76 = vpop.permute.xlu0 %75
    %vm77 = vcmp.eq.s32.totalorder %v38, %v73
    %vm78 = vcmp.eq.s32.totalorder %v38, %v76
    %v79 = vadd.s32 %v67, 65
    %v80 = vadd.s32 %v68, 65
    %vm81 = vcmp.eq.s32.totalorder %v38, %v79
    %vm82 = vcmp.eq.s32.totalorder %v38, %v80
    %vm83 = vmor %vm77, %vm81
    %vm84 = vmor %vm78, %vm82
    %v85 = vsel %vm83, 1, 0
    %v86 = vsel %vm84, 1, 0
    %v87 = vcvt.s32.f32 %v85
    %v88 = vcvt.s32.f32 %v86
    %v89 = vpack.c.bf16 %v88, %v87
    %v90 = vld [vmem:[#allocation2] sm:$0xf]
    %v91 = vld [vmem:[#allocation2 + $0x4] sm:$0xf]
    %v92 = vld [vmem:[#allocation2 + $0x8] sm:$0xf]
    %v93 = vld [vmem:[#allocation2 + $0xc] sm:$0xf]
    %v94 = vld [vmem:[#allocation2 + $0x10] sm:$0xf]
    %v95 = vld [vmem:[#allocation2 + $0x14] sm:$0xf]
    %v96 = vld [vmem:[#allocation2 + $0x18] sm:$0xf]
    %v97 = vld [vmem:[#allocation2 + $0x1c] sm:$0xf]
    %v98 = vld [vmem:[#allocation2 + $0x20] sm:$0xf]
    %v99 = vld [vmem:[#allocation2 + $0x24] sm:$0xf]
    %v100 = vld [vmem:[#allocation2 + $0x28] sm:$0xf]
    %v101 = vld [vmem:[#allocation2 + $0x2c] sm:$0xf]
    %v102 = vld [vmem:[#allocation2 + $0x30] sm:$0xf]
    %v103 = vld [vmem:[#allocation2 + $0x34] sm:$0xf]
    %v104 = vld [vmem:[#allocation2 + $0x38] sm:$0xf]
    %v105 = vld [vmem:[#allocation2 + $0x3c] sm:$0xf]
    %v106 = vld [vmem:[%s3] sm:$0x1]
    %v108 = vlaneseq
    %v109 = vshrl.u32 %v108, 7
    %v110 = vsub.s32 0, %v109
    %v111 = vrot.slane %v106, %v110
    %v129 = vunpack.c.l.b16 %v90
    %v130 = vunpack.c.l.b16 %v91
    %v131 = vunpack.c.l.b16 %v92
    %v132 = vunpack.c.l.b16 %v93
    %v133 = vunpack.c.l.b16 %v94
    %v134 = vunpack.c.l.b16 %v95
    %v135 = vunpack.c.l.b16 %v96
    %v136 = vunpack.c.l.b16 %v97
    %v137 = vunpack.c.l.b16 %v98
    %v138 = vunpack.c.l.b16 %v99
    %v139 = vunpack.c.l.b16 %v100
    %v140 = vunpack.c.l.b16 %v101
    %v141 = vunpack.c.l.b16 %v102
    %v142 = vunpack.c.l.b16 %v103
    %v143 = vunpack.c.l.b16 %v104
    %v144 = vunpack.c.l.b16 %v105
    %v145 = vpack.c.b16 %v130, %v129
    %v146 = vpack.c.b16 %v132, %v131
    %v147 = vpack.c.b16 %v134, %v133
    %v148 = vpack.c.b16 %v136, %v135
    %v149 = vpack.c.b16 %v138, %v137
    %v150 = vpack.c.b16 %v140, %v139
    %v151 = vpack.c.b16 %v142, %v141
    %v152 = vpack.c.b16 %v144, %v143
    %161 = vmatprep.subr.bf16.mxu0 0
    %162 = vmatpush1.bf16.msra.mxu0 %v152
    %163 = vmatprep.subr.bf16.mxu0 0
    %164 = vmatpush1.bf16.msra.mxu0 %v151
    %165 = vmatprep.subr.bf16.mxu0 0
    %166 = vmatpush1.bf16.msra.mxu0 %v150
    %167 = vmatprep.subr.bf16.mxu0 0
    %168 = vmatpush1.bf16.msra.mxu0 %v149
    %169 = vmatprep.subr.bf16.mxu0 0
    %170 = vmatpush1.bf16.msra.mxu0 %v148
    %171 = vmatprep.subr.bf16.mxu0 0
    %172 = vmatpush1.bf16.msra.mxu0 %v147
    %173 = vmatprep.subr.bf16.mxu0 0
    %174 = vmatpush1.bf16.msra.mxu0 %v146
    %175 = vmatprep.subr.bf16.mxu0 0
    %176 = vmatpush1.bf16.msra.mxu0 %v145
    %177 = vmatprep.subr.bf16.mxu0 0
    %178 = vmatpush2.bf16.msra.mxu0 0
    %179 = vmatprep.subr.bf16.mxu0 0
    %180 = vmatpush2.bf16.msra.mxu0 0
    %181 = vmatprep.subr.bf16.mxu0 0
    %182 = vmatpush2.bf16.msra.mxu0 0
    %183 = vmatprep.subr.bf16.mxu0 0
    %184 = vmatpush2.bf16.msra.mxu0 0
    %185 = vmatprep.subr.bf16.mxu0 0
    %186 = vmatpush2.bf16.msra.mxu0 0
    %187 = vmatprep.subr.bf16.mxu0 0
    %188 = vmatpush2.bf16.msra.mxu0 0
    %189 = vmatprep.subr.bf16.mxu0 0
    %190 = vmatpush2.bf16.msra.mxu0 0
    %191 = vmatprep.subr.bf16.mxu0 0
    %192 = vmatpush2.bf16.msra.mxu0 0
    %193 = vmatprep.mubr.bf16.mxu0 0
    %194 = vmatmul.mubr.bf16.gmra.mxu0 %v89
    %v195 = vpop.f32.mrf.mxu0
    %v196 = vadd.f32 %v111, %v195
    %v197 = vpop.f32.mrf.mxu0
    %v198 = vpop.f32.mrf.mxu0
    %v199 = vadd.f32 %v111, %v198
    %v200 = vpop.f32.mrf.mxu0
    %201 = vdwg.mxu0
    %202 = vst [vmem:[#allocation5] sm:$0xff] %v196
    %203 = vst [vmem:[#allocation5 + $0x8] sm:$0xff] %v199
    %204 = vmax.xlane.f32.xlu0 %v196
    %v205 = vpop.xlane.xlu0 %204
    %206 = vmax.xlane.f32.xlu0 %v199
    %v207 = vpop.xlane.xlu0 %206
    %v208 = vsub.f32 %v196, %v205
    %v209 = vsub.f32 %v199, %v207
    %v210 = vmul.f32 %v208, 1.442695
    %v211 = vpow.pop %v210
    %v212 = vmul.f32 %v209, 1.442695
    %v213 = vpow.pop %v212
    %214 = vadd.xlane.f32.xlu0 %v211
    %v215 = vpop.xlane.xlu0 %214
    %216 = vadd.xlane.f32.xlu0 %v213
    %v217 = vpop.xlane.xlu0 %216
    %v218 = vlog2.pop %v215
    %v219 = vmul.f32 %v218, 0.6931472
    %v220 = vlog2.pop %v217
    %v221 = vmul.f32 %v220, 0.6931472
    %v222 = vadd.f32 %v205, %v219
    %v223 = vadd.f32 %v207, %v221
    %v224 = vld [vmem:[%s1] sm:$0xff]
    %v225 = vld [vmem:[%s1 + $0x8] sm:$0xff]
    %226 = vset.pattern.permute.xlu0 0
    %227 = vperm.xlu0 %226, %v224
    %v228 = vpop.permute.xlu0 %227
    %229 = vset.pattern.permute.xlu0 0
    %230 = vperm.xlu0 %229, %v225
    %v231 = vpop.permute.xlu0 %230
    %vm232 = vcmp.eq.s32.totalorder %v38, %v228
    %vm233 = vcmp.eq.s32.totalorder %v38, %v231
    %v234 = vsel %vm232, %v196, 0.0
    %v235 = vsel %vm233, %v199, 0.0
    %236 = vadd.xlane.f32.xlu0 %v234
    %v237 = vpop.xlane.xlu0 %236
    %238 = vadd.xlane.f32.xlu0 %v235
    %v239 = vpop.xlane.xlu0 %238
    %v240 = vsub.f32 %v222, %v237
    %v241 = vsub.f32 %v223, %v239
    %vm242 = vcmp.lt.s32.totalorder %v43, 16
    %vm243 = vcmp.lt.s32.totalorder %v44, 16
    %vm244 = vcmp.eq.s32.totalorder %v38, 0
    %vm245 = vmand %vm242, %vm244
    %vm246 = vmand %vm243, %vm244
    %v247 = vsel %vm245, %v240, 0.0
    %v248 = vsel %vm246, %v241, 0.0
    %v249 = vadd.f32 %v247, %v248
    %250 = vadd.xlane.f32.xlu0 %v249
    %v251 = vpop.xlane.xlu0 %250
    %v252 = vrot.slane %v251, 4
    %v253 = vadd.f32 %v251, %v252
    %v254 = vrot.slane %v253, 2
    %v255 = vadd.f32 %v253, %v254
    %v256 = vrot.slane %v255, 1
    %v257 = vadd.f32 %v255, %v256
    %s258 = vtos %v257
    %v259 = vstv %s258
    %260 = vst [vmem:[#allocation6] sm:$0xff] %v259
    // Predicated region
    $region22: #{tpu_custom_call.1} parent=1 // pred_check
      _
    $region23: #{tpu_custom_call.1} parent=1 // pred_check_branch
      %262 = sbr.rel (0) target = $region25
    $region24: #{tpu_custom_call.1} parent=1 // pred_region
      %s264 = ssub.s32 256, 256
      %265 = vsyncadd [#allocation4], %s264
      %s266 = sshll.u32 [#allocation5], 4
      %s267 = int_to_ptr.vmem [resolvable:$true] %s266
      %272 = dma.vmem_to_hbm [thread:$0]  %s267, 256, %s4, [#allocation4], 128, 128, 8
    $region25: #{tpu_custom_call.1} parent=1 // pred_fallthru
      _
    // Predicated region
    $region26: #{tpu_custom_call.1} parent=1 // pred_check
      _
    $region27: #{tpu_custom_call.1} parent=1 // pred_check_branch
      %274 = sbr.rel (0) target = $region29
    $region28: #{tpu_custom_call.1} parent=1 // pred_region
      %s276 = ssub.s32 128, 128
      %277 = vsyncadd [#allocation7], %s276
      %s279 = sshll.u32 [#allocation6], 4
      %s280 = int_to_ptr.vmem [resolvable:$true] %s279
      %282 = dma.vmem_to_hbm [thread:$0]  %s280, 128, %s5, [#allocation7]
    $region29: #{tpu_custom_call.1} parent=1 // pred_fallthru
      _
    // Predicated region
    $region30: #{tpu_custom_call.1} parent=1 // pred_check
      _
    $region31: #{tpu_custom_call.1} parent=1 // pred_check_branch
      %284 = sbr.rel (0) target = $region33
    $region32: #{tpu_custom_call.1} parent=1 // pred_region
      %285 = dma.done [#allocation4], 256
    $region33: #{tpu_custom_call.1} parent=1 // pred_fallthru
      _
    // Predicated region
    $region34: #{tpu_custom_call.1} parent=1 // pred_check
      _
    $region35: #{tpu_custom_call.1} parent=1 // pred_check_branch
      %287 = sbr.rel (0) target = $region37
    $region36: #{tpu_custom_call.1} parent=1 // pred_region
      %288 = dma.done [#allocation7], 128
    $region37: #{tpu_custom_call.1} parent=1 // pred_fallthru
      _
    %289 = vsyncpa [#allocation3], 1
    %290 = vsyncpa [#allocation4], 1
    %291 = vsyncpa [#allocation7], 1

</llo_original>
